<compile_context>
chip_gen: v6e
topology: v6e:2x2x1
jax: 0.10.0
libtpu: 0.0.40
codegen_flags: <defaults>
</compile_context>

<pallas_src>
import jax
import jax.numpy as jnp
from jax import lax
from jax.experimental import pallas as pl
from jax.experimental.pallas import tpu as pltpu

LANE = 128   # TPU lane width; all feature dims are zero-padded up to this.
SUB = 128    # in-kernel sub-tile (rows) for the fused matmul chain.
GRAN = 16    # bf16 sublane-packing granularity for batch tiles.


def _round_up(n, m):
    return ((n + m - 1) // m) * m


def _pad2(a, rows, cols):
    return jnp.pad(a, ((0, rows - a.shape[0]), (0, cols - a.shape[1])))


# --------------------------------------------------------------------------- #
# Kernel
# --------------------------------------------------------------------------- #
def se_resnet_kernel(x_ref, w_ref, b_ref, o_ref):
    """Fused SE-ResNet MLP forward for one (TM, 128) batch tile.

    x_ref : (TM, 128)     bf16  input tile (in_features zero-padded to 128)
    w_ref : (6, 128, 128) bf16  [w_in, w_r1, w_r2, w_se1, w_se2, w_out], zero-padded
    b_ref : (8, 128)      f32   rows 0..5 = matching biases (zero-padded)
    o_ref : (TM, 128)     bf16  output tile (embed_dim zero-padded to 128)
    """
    f32 = jnp.float32
    bf16 = jnp.bfloat16

    def linear(a_bf16, idx):
        # bf16 MXU operands, f32 accumulation; bias add stays in f32.
        return (
            jnp.dot(a_bf16, w_ref[idx], preferred_element_type=f32)
            + b_ref[idx : idx + 1, :]
        )

    def chain(x_bf16):
        # out = relu(fc_in(x))
        h = jnp.maximum(linear(x_bf16, 0), 0.0)
        residual = h
        # out_block = fc_res2(relu(fc_res1(out)))
        t = jnp.maximum(linear(h.astype(bf16), 1), 0.0)
        t = linear(t.astype(bf16), 2)
        # out = relu(residual + out_block)
        h = jnp.maximum(residual + t, 0.0)
        # SE gate: g = sigmoid(se_fc2(relu(se_fc1(out))))
        g = jnp.maximum(linear(h.astype(bf16), 3), 0.0)
        g = jax.nn.sigmoid(linear(g.astype(bf16), 4))
        # out_embed = fc_out(out * g)
        return linear((h * g).astype(bf16), 5)

    tm = x_ref.shape[0]
    if tm <= SUB:
        # Single sub-tile: process the whole block directly (lane-dense store).
        o_ref[...] = chain(x_ref[...]).astype(o_ref.dtype)
    else:
        # Larger batch tile: walk SUB-row sub-chunks so live f32 intermediates
        # stay well inside the 64-vreg file while the per-step DMA is big.
        n_sub = tm // SUB

        def body(s, carry):
            row = pl.multiple_of(s * SUB, SUB)
            xs = x_ref[pl.ds(row, SUB), :]
            o_ref[pl.ds(row, SUB), :] = chain(xs).astype(o_ref.dtype)
            return carry

        lax.fori_loop(0, n_sub, body, 0, unroll=(n_sub <= 8))


# --------------------------------------------------------------------------- #
# Wrapper
# --------------------------------------------------------------------------- #
def pack_params(params):
    """Pack the 12 parameter tensors into one bf16 weight slab (6,128,128) and
    one f32 bias slab (8,128), zero-padded so every matmul dim is lane-dense."""
    order = ["in", "r1", "r2", "se1", "se2", "out"]
    for k in order:
        w = params[f"w_{k}"]
        assert w.shape[0] <= LANE and w.shape[1] <= LANE, "feature dims must be <= 128"
    w_slab = jnp.stack(
        [_pad2(params[f"w_{k}"], LANE, LANE) for k in order]
    ).astype(jnp.bfloat16)                                        # (6, 128, 128)
    b_rows = [_pad2(params[f"b_{k}"], 1, LANE) for k in order]
    b_rows.append(jnp.zeros((2, LANE), jnp.float32))              # pad sublanes 6..7
    b_slab = jnp.concatenate(b_rows, axis=0).astype(jnp.float32)  # (8, 128)
    return w_slab, b_slab


def _choose_tile(batch, block_m):
    """Pick (tm, b_pad): big tiles, >=2 grid steps when the batch allows (v7x
    megacore), tm a multiple of SUB when tm > SUB so the inner loop divides."""
    assert block_m >= SUB and block_m % SUB == 0
    b8 = _round_up(max(batch, 1), GRAN)
    if b8 <= 2 * GRAN:
        tm = b8                                   # too small to split usefully
    else:
        tm = min(block_m, _round_up(-(-b8 // 2), GRAN))   # ~half => >=2 steps
        if tm > SUB:
            tm = min(block_m, _round_up(tm, SUB))
    b_pad = _round_up(b8, tm)
    return tm, b_pad


def se_resnet_forward(x, params, *, block_m=512):
    """x: (batch, in_features) f32. params: dict of (in,out) weights + (1,out) biases."""
    batch, in_features = x.shape
    embed_dim = params["w_out"].shape[1]
    assert in_features <= LANE, f"in_features must be <= {LANE} (got {in_features})"
    assert embed_dim <= LANE, f"embed_dim must be <= {LANE} (got {embed_dim})"

    w_slab, b_slab = pack_params(params)
    tm, b_pad = _choose_tile(batch, block_m)

    # bf16 input tile: halves input HBM traffic; padded lanes/rows are exact zeros.
    x_pad = jnp.pad(
        x.astype(jnp.bfloat16), ((0, b_pad - batch), (0, LANE - in_features))
    )

    flops = 2 * b_pad * LANE * LANE * 6
    bytes_accessed = (
        x_pad.size * 2 + b_pad * LANE * 2 + w_slab.size * 2 + b_slab.size * 4
    )

    out_pad = pl.pallas_call(
        se_resnet_kernel,
        out_shape=jax.ShapeDtypeStruct((b_pad, LANE), jnp.bfloat16),
        grid=(b_pad // tm,),
        in_specs=[
            pl.BlockSpec((tm, LANE), lambda i: (i, 0)),          # x: batch-tiled
            pl.BlockSpec((6, LANE, LANE), lambda i: (0, 0, 0)),  # weights: VMEM-resident
            pl.BlockSpec((8, LANE), lambda i: (0, 0)),           # biases: VMEM-resident
        ],
        out_specs=pl.BlockSpec((tm, LANE), lambda i: (i, 0)),
        compiler_params=pltpu.CompilerParams(
            dimension_semantics=("parallel",),   # megacore sharding on v7x
            vmem_limit_bytes=32 * 1024 * 1024,   # safe on v5e/v6e/v7x (64 MiB phys)
        ),
        cost_estimate=pl.CostEstimate(
            flops=flops,
            transcendentals=b_pad * LANE,        # sigmoid
            bytes_accessed=bytes_accessed,
        ),
    )(x_pad, w_slab, b_slab)

    return out_pad[:batch, :embed_dim].astype(jnp.float32)


# --------------------------------------------------------------------------- #
# Parameters + pure-JAX reference (mirrors the PyTorch module)
# --------------------------------------------------------------------------- #
def init_params(key, in_features, embed_dim, hidden_dim=64, reduction=16):
    """Deterministic synthetic parameters; weights stored (in, out), biases (1, out)."""
    se_dim = max(hidden_dim // reduction, 1)
    shapes = {
        "w_in": (in_features, hidden_dim), "b_in": (1, hidden_dim),
        "w_r1": (hidden_dim, hidden_dim),  "b_r1": (1, hidden_dim),
        "w_r2": (hidden_dim, hidden_dim),  "b_r2": (1, hidden_dim),
        "w_se1": (hidden_dim, se_dim),     "b_se1": (1, se_dim),
        "w_se2": (se_dim, hidden_dim),     "b_se2": (1, hidden_dim),
        "w_out": (hidden_dim, embed_dim),  "b_out": (1, embed_dim),
    }
    params = {}
    for name, shape in shapes.items():
        key, sub = jax.random.split(key)
        params[name] = 0.1 * jax.random.normal(sub, shape, dtype=jnp.float32)
    return params


def reference_forward(x, p, dot_dtype=None):
    """Pure-JAX reference. dot_dtype=jnp.bfloat16 mimics the kernel's MXU casts."""
    def dot(a, w):
        if dot_dtype is not None:
            a, w = a.astype(dot_dtype), w.astype(dot_dtype)
        return jnp.dot(a, w, preferred_element_type=jnp.float32)

    h = jnp.maximum(dot(x, p["w_in"]) + p["b_in"], 0.0)
    residual = h
    t = jnp.maximum(dot(h, p["w_r1"]) + p["b_r1"], 0.0)
    t = dot(t, p["w_r2"]) + p["b_r2"]
    h = jnp.maximum(residual + t, 0.0)
    g = jnp.maximum(dot(h, p["w_se1"]) + p["b_se1"], 0.0)
    g = jax.nn.sigmoid(dot(g, p["w_se2"]) + p["b_se2"])
    return dot(h * g, p["w_out"]) + p["b_out"]


if __name__ == "__main__":
    batch, in_features, embed_dim, hidden_dim, reduction = 8, 16, 32, 64, 16

    key = jax.random.PRNGKey(0)
    key, kx = jax.random.split(key)
    x = jax.random.normal(kx, (batch, in_features), dtype=jnp.float32)
    params = init_params(key, in_features, embed_dim, hidden_dim, reduction)

    out = jax.block_until_ready(se_resnet_forward(x, params))
    assert out.shape == (batch, embed_dim)

    ref_bf16 = reference_forward(x, params, dot_dtype=jnp.bfloat16)
    ref_f32 = reference_forward(x, params)
    # Kernel uses bf16 MXU operands + bf16 output storage; elementwise math in f32.
    assert jnp.allclose(out, ref_bf16, atol=1.5e-2, rtol=1.5e-2), "mismatch vs bf16 reference"
    assert jnp.allclose(out, ref_f32, atol=5e-2, rtol=5e-2), "mismatch vs f32 reference"

    print("KERNEL_OK")
</pallas_src>

<mosaic_0001>
module attributes {stable_mosaic.version = 11 : i64} {
  func.func @se_resnet_kernel(%arg0: i32, %arg1: memref<16x128xbf16, #tpu.memory_space<vmem>>, %arg2: memref<6x128x128xbf16, #tpu.memory_space<vmem>>, %arg3: memref<8x128xf32, #tpu.memory_space<vmem>>, %arg4: memref<16x128xbf16, #tpu.memory_space<vmem>>) attributes {dimension_semantics = [#tpu.dimension_semantics<parallel>], iteration_bounds = array<i64: 1>, scalar_prefetch = 0 : i64, scratch_operands = 0 : i64, tpu.core_type = #tpu.core_type<tc>, window_params = [{transform_indices = @transform_0, window_bounds = array<i64: 16, 128>}, {pipeline_mode = #tpu.pipeline_mode<synchronous>, transform_indices = @transform_1, window_bounds = array<i64: 6, 128, 128>}, {pipeline_mode = #tpu.pipeline_mode<synchronous>, transform_indices = @transform_2, window_bounds = array<i64: 8, 128>}, {transform_indices = @transform_3, window_bounds = array<i64: 16, 128>}]} {
    %c0 = arith.constant 0 : index
    %c0_0 = arith.constant 0 : index
    %0 = vector.load %arg1[%c0, %c0_0] : memref<16x128xbf16, #tpu.memory_space<vmem>>, vector<16x128xbf16>
    %c0_1 = arith.constant 0 : index
    %c0_2 = arith.constant 0 : index
    %c0_3 = arith.constant 0 : index
    %1 = vector.load %arg2[%c0_1, %c0_2, %c0_3] : memref<6x128x128xbf16, #tpu.memory_space<vmem>>, vector<1x128x128xbf16>
    %2 = vector.shape_cast %1 : vector<1x128x128xbf16> to vector<128x128xbf16>
    %cst = arith.constant dense<0.000000e+00> : vector<16x128xf32>
    %3 = tpu.matmul %0, %2, %cst {dimension_numbers = #tpu.dot_dimension_numbers<[1], [0], [0], [1], [0, 0, 1, 1], [], []>} : vector<16x128xbf16>, vector<128x128xbf16>, vector<16x128xf32> -> vector<16x128xf32>
    %c0_4 = arith.constant 0 : index
    %c0_5 = arith.constant 0 : index
    %4 = vector.load %arg3[%c0_4, %c0_5] : memref<8x128xf32, #tpu.memory_space<vmem>>, vector<1x128xf32>
    %5 = vector.broadcast %4 : vector<1x128xf32> to vector<16x128xf32>
    %6 = arith.addf %3, %5 : vector<16x128xf32>
    %cst_6 = arith.constant 0.000000e+00 : f32
    %7 = vector.broadcast %cst_6 : f32 to vector<16x128xf32>
    %8 = arith.maximumf %6, %7 : vector<16x128xf32>
    %9 = arith.truncf %8 : vector<16x128xf32> to vector<16x128xbf16>
    %c1 = arith.constant 1 : index
    %c0_7 = arith.constant 0 : index
    %c0_8 = arith.constant 0 : index
    %10 = vector.load %arg2[%c1, %c0_7, %c0_8] : memref<6x128x128xbf16, #tpu.memory_space<vmem>>, vector<1x128x128xbf16>
    %11 = vector.shape_cast %10 : vector<1x128x128xbf16> to vector<128x128xbf16>
    %cst_9 = arith.constant dense<0.000000e+00> : vector<16x128xf32>
    %12 = tpu.matmul %9, %11, %cst_9 {dimension_numbers = #tpu.dot_dimension_numbers<[1], [0], [0], [1], [0, 0, 1, 1], [], []>} : vector<16x128xbf16>, vector<128x128xbf16>, vector<16x128xf32> -> vector<16x128xf32>
    %c1_10 = arith.constant 1 : index
    %c0_11 = arith.constant 0 : index
    %13 = vector.load %arg3[%c1_10, %c0_11] : memref<8x128xf32, #tpu.memory_space<vmem>>, vector<1x128xf32>
    %14 = vector.broadcast %13 : vector<1x128xf32> to vector<16x128xf32>
    %15 = arith.addf %12, %14 : vector<16x128xf32>
    %cst_12 = arith.constant 0.000000e+00 : f32
    %16 = vector.broadcast %cst_12 : f32 to vector<16x128xf32>
    %17 = arith.maximumf %15, %16 : vector<16x128xf32>
    %18 = arith.truncf %17 : vector<16x128xf32> to vector<16x128xbf16>
    %c2 = arith.constant 2 : index
    %c0_13 = arith.constant 0 : index
    %c0_14 = arith.constant 0 : index
    %19 = vector.load %arg2[%c2, %c0_13, %c0_14] : memref<6x128x128xbf16, #tpu.memory_space<vmem>>, vector<1x128x128xbf16>
    %20 = vector.shape_cast %19 : vector<1x128x128xbf16> to vector<128x128xbf16>
    %cst_15 = arith.constant dense<0.000000e+00> : vector<16x128xf32>
    %21 = tpu.matmul %18, %20, %cst_15 {dimension_numbers = #tpu.dot_dimension_numbers<[1], [0], [0], [1], [0, 0, 1, 1], [], []>} : vector<16x128xbf16>, vector<128x128xbf16>, vector<16x128xf32> -> vector<16x128xf32>
    %c2_16 = arith.constant 2 : index
    %c0_17 = arith.constant 0 : index
    %22 = vector.load %arg3[%c2_16, %c0_17] : memref<8x128xf32, #tpu.memory_space<vmem>>, vector<1x128xf32>
    %23 = vector.broadcast %22 : vector<1x128xf32> to vector<16x128xf32>
    %24 = arith.addf %21, %23 : vector<16x128xf32>
    %25 = arith.addf %8, %24 : vector<16x128xf32>
    %cst_18 = arith.constant 0.000000e+00 : f32
    %26 = vector.broadcast %cst_18 : f32 to vector<16x128xf32>
    %27 = arith.maximumf %25, %26 : vector<16x128xf32>
    %28 = arith.truncf %27 : vector<16x128xf32> to vector<16x128xbf16>
    %c3 = arith.constant 3 : index
    %c0_19 = arith.constant 0 : index
    %c0_20 = arith.constant 0 : index
    %29 = vector.load %arg2[%c3, %c0_19, %c0_20] : memref<6x128x128xbf16, #tpu.memory_space<vmem>>, vector<1x128x128xbf16>
    %30 = vector.shape_cast %29 : vector<1x128x128xbf16> to vector<128x128xbf16>
    %cst_21 = arith.constant dense<0.000000e+00> : vector<16x128xf32>
    %31 = tpu.matmul %28, %30, %cst_21 {dimension_numbers = #tpu.dot_dimension_numbers<[1], [0], [0], [1], [0, 0, 1, 1], [], []>} : vector<16x128xbf16>, vector<128x128xbf16>, vector<16x128xf32> -> vector<16x128xf32>
    %c3_22 = arith.constant 3 : index
    %c0_23 = arith.constant 0 : index
    %32 = vector.load %arg3[%c3_22, %c0_23] : memref<8x128xf32, #tpu.memory_space<vmem>>, vector<1x128xf32>
    %33 = vector.broadcast %32 : vector<1x128xf32> to vector<16x128xf32>
    %34 = arith.addf %31, %33 : vector<16x128xf32>
    %cst_24 = arith.constant 0.000000e+00 : f32
    %35 = vector.broadcast %cst_24 : f32 to vector<16x128xf32>
    %36 = arith.maximumf %34, %35 : vector<16x128xf32>
    %37 = arith.truncf %36 : vector<16x128xf32> to vector<16x128xbf16>
    %c4 = arith.constant 4 : index
    %c0_25 = arith.constant 0 : index
    %c0_26 = arith.constant 0 : index
    %38 = vector.load %arg2[%c4, %c0_25, %c0_26] : memref<6x128x128xbf16, #tpu.memory_space<vmem>>, vector<1x128x128xbf16>
    %39 = vector.shape_cast %38 : vector<1x128x128xbf16> to vector<128x128xbf16>
    %cst_27 = arith.constant dense<0.000000e+00> : vector<16x128xf32>
    %40 = tpu.matmul %37, %39, %cst_27 {dimension_numbers = #tpu.dot_dimension_numbers<[1], [0], [0], [1], [0, 0, 1, 1], [], []>} : vector<16x128xbf16>, vector<128x128xbf16>, vector<16x128xf32> -> vector<16x128xf32>
    %c4_28 = arith.constant 4 : index
    %c0_29 = arith.constant 0 : index
    %41 = vector.load %arg3[%c4_28, %c0_29] : memref<8x128xf32, #tpu.memory_space<vmem>>, vector<1x128xf32>
    %42 = vector.broadcast %41 : vector<1x128xf32> to vector<16x128xf32>
    %43 = arith.addf %40, %42 : vector<16x128xf32>
    %44 = arith.negf %43 : vector<16x128xf32>
    %45 = math.exp %44 : vector<16x128xf32>
    %cst_30 = arith.constant 1.000000e+00 : f32
    %46 = vector.broadcast %cst_30 : f32 to vector<16x128xf32>
    %47 = arith.addf %46, %45 : vector<16x128xf32>
    %48 = arith.divf %46, %47 : vector<16x128xf32>
    %49 = arith.mulf %27, %48 : vector<16x128xf32>
    %50 = arith.truncf %49 : vector<16x128xf32> to vector<16x128xbf16>
    %c5 = arith.constant 5 : index
    %c0_31 = arith.constant 0 : index
    %c0_32 = arith.constant 0 : index
    %51 = vector.load %arg2[%c5, %c0_31, %c0_32] : memref<6x128x128xbf16, #tpu.memory_space<vmem>>, vector<1x128x128xbf16>
    %52 = vector.shape_cast %51 : vector<1x128x128xbf16> to vector<128x128xbf16>
    %cst_33 = arith.constant dense<0.000000e+00> : vector<16x128xf32>
    %53 = tpu.matmul %50, %52, %cst_33 {dimension_numbers = #tpu.dot_dimension_numbers<[1], [0], [0], [1], [0, 0, 1, 1], [], []>} : vector<16x128xbf16>, vector<128x128xbf16>, vector<16x128xf32> -> vector<16x128xf32>
    %c5_34 = arith.constant 5 : index
    %c0_35 = arith.constant 0 : index
    %54 = vector.load %arg3[%c5_34, %c0_35] : memref<8x128xf32, #tpu.memory_space<vmem>>, vector<1x128xf32>
    %55 = vector.broadcast %54 : vector<1x128xf32> to vector<16x128xf32>
    %56 = arith.addf %53, %55 : vector<16x128xf32>
    %57 = arith.truncf %56 : vector<16x128xf32> to vector<16x128xbf16>
    %c0_36 = arith.constant 0 : index
    %c0_37 = arith.constant 0 : index
    %58 = vector.load %arg4[%c0_36, %c0_37] : memref<16x128xbf16, #tpu.memory_space<vmem>>, vector<16x128xbf16>
    tpu.vector_store %arg4[%c0_36, %c0_37], %57 {strides = array<i32>} : memref<16x128xbf16, #tpu.memory_space<vmem>>, vector<16x128xbf16>,
    return
  }
  func.func @transform_0(%arg0: i32) -> (i32, i32) {
    %c0_i32 = arith.constant 0 : i32
    %c0_i32_0 = arith.constant 0 : i32
    return %arg0, %c0_i32 : i32, i32
  }
  func.func @transform_1(%arg0: i32) -> (i32, i32, i32) {
    %c0_i32 = arith.constant 0 : i32
    %c0_i32_0 = arith.constant 0 : i32
    %c0_i32_1 = arith.constant 0 : i32
    %c0_i32_2 = arith.constant 0 : i32
    return %c0_i32, %c0_i32_0, %c0_i32_1 : i32, i32, i32
  }
  func.func @transform_2(%arg0: i32) -> (i32, i32) {
    %c0_i32 = arith.constant 0 : i32
    %c0_i32_0 = arith.constant 0 : i32
    %c0_i32_1 = arith.constant 0 : i32
    return %c0_i32, %c0_i32_0 : i32, i32
  }
  func.func @transform_3(%arg0: i32) -> (i32, i32) {
    %c0_i32 = arith.constant 0 : i32
    %c0_i32_0 = arith.constant 0 : i32
    return %arg0, %c0_i32 : i32, i32
  }
}

</mosaic_0001>

<llo_original>
// kernel: tpu_custom_call.1
$region0: #{tpu_custom_call.1}
  #allocation0 [shape = 'u32[]', space=smem, size = 0x4, offset = 0x4, fixed_abs, tag = 'smem constant byte address 0x4 - core index']
  #allocation1 [shape = 'u32[144,128]{1,0:T(1,128)}', space=vmem, size = 0x12000, scoped, tag = 'internal scratch']
  %s0 = inlined_call_operand.hbm [shape: bf16[16,128], index: 0, kind: input, shape index: {}]
  %s1 = inlined_call_operand.hbm [shape: bf16[6,128,128], index: 1, kind: input, shape index: {}]
  %s2 = inlined_call_operand.hbm [shape: f32[8,128], index: 2, kind: input, shape index: {}]
  %s3 = inlined_call_operand.hbm [shape: bf16[16,128], index: 3, kind: output, shape index: {}]
  %s4 = sld [smem:[#allocation0]]
  $region34: #{tpu_custom_call.1} parent=0
    _
  %s6 = ssub.s32 1, %s4
  %s7 = scalar_select 0, %s6, %s4
  $region1: #{tpu_custom_call.1} parent=0
    #allocation2 [shape = 'u8[4096]{0}', space=vmem, size = 0x1000, scoped, tag = 'input window, operand 0, single buffered']
    #allocation3 [shape = 's32[1]{0}', space=sflag, size = 0x4, scoped, tag = 'scoped memory for tpu_custom_call.1']
    #allocation4 [shape = 's32[1]{0}', space=sflag, size = 0x4, scoped, tag = 'scoped memory for tpu_custom_call.1']
    #allocation5 [shape = 'u8[196608]{0}', space=vmem, size = 0x30000, scoped, tag = 'input window, operand 1, single buffered']
    #allocation6 [shape = 's32[1]{0}', space=sflag, size = 0x4, scoped, tag = 'scoped memory for tpu_custom_call.1']
    #allocation7 [shape = 'u8[4096]{0}', space=vmem, size = 0x1000, scoped, tag = 'input window, operand 2, single buffered']
    #allocation8 [shape = 'u8[4096]{0}', space=vmem, size = 0x1000, scoped, tag = 'output window, operand 0, single buffered']
    %8 = vsyncpa [#allocation3], 0
    %9 = vsyncpa [#allocation6], 0
    %10 = vsyncpa [#allocation4], 0
    // Predicated region
    $region2: #{tpu_custom_call.1} parent=1 // pred_check
      _
    $region3: #{tpu_custom_call.1} parent=1 // pred_check_branch
      %12 = sbr.rel (0) target = $region5
    $region4: #{tpu_custom_call.1} parent=1 // pred_region
      %s14 = ssub.s32 128, 128
      %15 = vsyncadd [#allocation3], %s14
      %s16 = sshll.u32 [#allocation2], 4
      %s17 = int_to_ptr.vmem [resolvable:$true] %s16
      %22 = dma.hbm_to_vmem [thread:$0]  %s0, 128, %s17, [#allocation3], 64, 64, 4
    $region5: #{tpu_custom_call.1} parent=1 // pred_fallthru
      _
    // Predicated region
    $region6: #{tpu_custom_call.1} parent=1 // pred_check
      _
    $region7: #{tpu_custom_call.1} parent=1 // pred_check_branch
      %24 = sbr.rel (0) target = $region9
    $region8: #{tpu_custom_call.1} parent=1 // pred_region
      %s26 = ssub.s32 6144, 6144
      %27 = vsyncadd [#allocation6], %s26
      %s28 = sshll.u32 [#allocation5], 4
      %s29 = int_to_ptr.vmem [resolvable:$true] %s28
      %34 = dma.hbm_to_vmem [thread:$0]  %s1, 6144, %s29, [#allocation6], 64, 64, 4
    $region9: #{tpu_custom_call.1} parent=1 // pred_fallthru
      _
    // Predicated region
    $region10: #{tpu_custom_call.1} parent=1 // pred_check
      _
    $region11: #{tpu_custom_call.1} parent=1 // pred_check_branch
      %36 = sbr.rel (0) target = $region13
    $region12: #{tpu_custom_call.1} parent=1 // pred_region
      %s38 = ssub.s32 128, 128
      %39 = vsyncadd [#allocation6], %s38
      %s41 = sshll.u32 [#allocation7], 4
      %s42 = int_to_ptr.vmem [resolvable:$true] %s41
      %44 = dma.hbm_to_vmem [thread:$0]  %s2, 128, %s42, [#allocation6]
    $region13: #{tpu_custom_call.1} parent=1 // pred_fallthru
      _
    // Predicated region
    $region14: #{tpu_custom_call.1} parent=1 // pred_check
      _
    $region15: #{tpu_custom_call.1} parent=1 // pred_check_branch
      %46 = sbr.rel (0) target = $region17
    $region16: #{tpu_custom_call.1} parent=1 // pred_region
      %47 = dma.done [#allocation3], 128
    $region17: #{tpu_custom_call.1} parent=1 // pred_fallthru
      _
    // Predicated region
    $region18: #{tpu_custom_call.1} parent=1 // pred_check
      _
    $region19: #{tpu_custom_call.1} parent=1 // pred_check_branch
      %49 = sbr.rel (0) target = $region21
    $region20: #{tpu_custom_call.1} parent=1 // pred_region
      %50 = dma.done [#allocation6], 6144
    $region21: #{tpu_custom_call.1} parent=1 // pred_fallthru
      _
    // Predicated region
    $region22: #{tpu_custom_call.1} parent=1 // pred_check
      _
    $region23: #{tpu_custom_call.1} parent=1 // pred_check_branch
      %52 = sbr.rel (0) target = $region25
    $region24: #{tpu_custom_call.1} parent=1 // pred_region
      %53 = dma.done [#allocation6], 128
    $region25: #{tpu_custom_call.1} parent=1 // pred_fallthru
      _
    %v55 = vld [vmem:[#allocation2] sm:$0xf]
    %v56 = vld [vmem:[#allocation2 + $0x4] sm:$0xf]
    %v57 = vld [vmem:[#allocation5] sm:$0xf]
    %v58 = vld [vmem:[#allocation5 + $0x4] sm:$0xf]
    %v59 = vld [vmem:[#allocation5 + $0x8] sm:$0xf]
    %v60 = vld [vmem:[#allocation5 + $0xc] sm:$0xf]
    %v61 = vld [vmem:[#allocation5 + $0x10] sm:$0xf]
    %v62 = vld [vmem:[#allocation5 + $0x14] sm:$0xf]
    %v63 = vld [vmem:[#allocation5 + $0x18] sm:$0xf]
    %v64 = vld [vmem:[#allocation5 + $0x1c] sm:$0xf]
    %v65 = vld [vmem:[#allocation5 + $0x20] sm:$0xf]
    %v66 = vld [vmem:[#allocation5 + $0x24] sm:$0xf]
    %v67 = vld [vmem:[#allocation5 + $0x28] sm:$0xf]
    %v68 = vld [vmem:[#allocation5 + $0x2c] sm:$0xf]
    %v69 = vld [vmem:[#allocation5 + $0x30] sm:$0xf]
    %v70 = vld [vmem:[#allocation5 + $0x34] sm:$0xf]
    %v71 = vld [vmem:[#allocation5 + $0x38] sm:$0xf]
    %v72 = vld [vmem:[#allocation5 + $0x3c] sm:$0xf]
    %v73 = vld [vmem:[#allocation7] sm:$0x1]
    %v74 = vlaneseq
    %v75 = vshrl.u32 %v74, 7
    %v76 = vsub.s32 0, %v75
    %v77 = vrot.slane %v73, %v76
    %v80 = vunpack.c.l.b16 %v55
    %v81 = vunpack.c.l.b16 %v56
    %v82 = vpack.c.b16 %v81, %v80
    %v100 = vunpack.c.l.b16 %v57
    %v101 = vunpack.c.l.b16 %v58
    %v102 = vunpack.c.l.b16 %v59
    %v103 = vunpack.c.l.b16 %v60
    %v104 = vunpack.c.l.b16 %v61
    %v105 = vunpack.c.l.b16 %v62
    %v106 = vunpack.c.l.b16 %v63
    %v107 = vunpack.c.l.b16 %v64
    %v108 = vunpack.c.l.b16 %v65
    %v109 = vunpack.c.l.b16 %v66
    %v110 = vunpack.c.l.b16 %v67
    %v111 = vunpack.c.l.b16 %v68
    %v112 = vunpack.c.l.b16 %v69
    %v113 = vunpack.c.l.b16 %v70
    %v114 = vunpack.c.l.b16 %v71
    %v115 = vunpack.c.l.b16 %v72
    %v116 = vpack.c.b16 %v101, %v100
    %v117 = vpack.c.b16 %v103, %v102
    %v118 = vpack.c.b16 %v105, %v104
    %v119 = vpack.c.b16 %v107, %v106
    %v120 = vpack.c.b16 %v109, %v108
    %v121 = vpack.c.b16 %v111, %v110
    %v122 = vpack.c.b16 %v113, %v112
    %v123 = vpack.c.b16 %v115, %v114
    %132 = vmatprep.subr.bf16.mxu0 0
    %133 = vmatpush1.bf16.msra.mxu0 %v123
    %134 = vmatprep.subr.bf16.mxu0 0
    %135 = vmatpush1.bf16.msra.mxu0 %v122
    %136 = vmatprep.subr.bf16.mxu0 0
    %137 = vmatpush1.bf16.msra.mxu0 %v121
    %138 = vmatprep.subr.bf16.mxu0 0
    %139 = vmatpush1.bf16.msra.mxu0 %v120
    %140 = vmatprep.subr.bf16.mxu0 0
    %141 = vmatpush1.bf16.msra.mxu0 %v119
    %142 = vmatprep.subr.bf16.mxu0 0
    %143 = vmatpush1.bf16.msra.mxu0 %v118
    %144 = vmatprep.subr.bf16.mxu0 0
    %145 = vmatpush1.bf16.msra.mxu0 %v117
    %146 = vmatprep.subr.bf16.mxu0 0
    %147 = vmatpush1.bf16.msra.mxu0 %v116
    %148 = vmatprep.subr.bf16.mxu0 0
    %149 = vmatpush2.bf16.msra.mxu0 0
    %150 = vmatprep.subr.bf16.mxu0 0
    %151 = vmatpush2.bf16.msra.mxu0 0
    %152 = vmatprep.subr.bf16.mxu0 0
    %153 = vmatpush2.bf16.msra.mxu0 0
    %154 = vmatprep.subr.bf16.mxu0 0
    %155 = vmatpush2.bf16.msra.mxu0 0
    %156 = vmatprep.subr.bf16.mxu0 0
    %157 = vmatpush2.bf16.msra.mxu0 0
    %158 = vmatprep.subr.bf16.mxu0 0
    %159 = vmatpush2.bf16.msra.mxu0 0
    %160 = vmatprep.subr.bf16.mxu0 0
    %161 = vmatpush2.bf16.msra.mxu0 0
    %162 = vmatprep.subr.bf16.mxu0 0
    %163 = vmatpush2.bf16.msra.mxu0 0
    %164 = vmatprep.mubr.bf16.mxu0 0
    %165 = vmatmul.mubr.bf16.gmra.mxu0 %v82
    %v166 = vpop.f32.mrf.mxu0
    %v167 = vadd.f32 %v77, %v166
    %v168 = vpop.f32.mrf.mxu0
    %v169 = vpop.f32.mrf.mxu0
    %v170 = vadd.f32 %v77, %v169
    %v171 = vpop.f32.mrf.mxu0
    %172 = vdwg.mxu0
    %v173 = vmax.f32 %v167, 0.0
    %v174 = vmax.f32 %v170, 0.0
    %v175 = vpack.c.bf16 %v174, %v173
    %s176 = scalar_lea.vmem [#allocation5], 64
    %v177 = vld [vmem:[%s176] sm:$0xf]
    %v178 = vld [vmem:[%s176 + $0x4] sm:$0xf]
    %v179 = vld [vmem:[%s176 + $0x8] sm:$0xf]
    %v180 = vld [vmem:[%s176 + $0xc] sm:$0xf]
    %v181 = vld [vmem:[%s176 + $0x10] sm:$0xf]
    %v182 = vld [vmem:[%s176 + $0x14] sm:$0xf]
    %v183 = vld [vmem:[%s176 + $0x18] sm:$0xf]
    %v184 = vld [vmem:[%s176 + $0x1c] sm:$0xf]
    %v185 = vld [vmem:[%s176 + $0x20] sm:$0xf]
    %v186 = vld [vmem:[%s176 + $0x24] sm:$0xf]
    %v187 = vld [vmem:[%s176 + $0x28] sm:$0xf]
    %v188 = vld [vmem:[%s176 + $0x2c] sm:$0xf]
    %v189 = vld [vmem:[%s176 + $0x30] sm:$0xf]
    %v190 = vld [vmem:[%s176 + $0x34] sm:$0xf]
    %v191 = vld [vmem:[%s176 + $0x38] sm:$0xf]
    %v192 = vld [vmem:[%s176 + $0x3c] sm:$0xf]
    %v193 = vld [vmem:[#allocation7 + $0x1] sm:$0x1]
    %v194 = vlaneseq
    %v195 = vshrl.u32 %v194, 7
    %v196 = vsub.s32 0, %v195
    %v197 = vrot.slane %v193, %v196
    %v214 = vunpack.c.l.b16 %v177
    %v215 = vunpack.c.l.b16 %v178
    %v216 = vunpack.c.l.b16 %v179
    %v217 = vunpack.c.l.b16 %v180
    %v218 = vunpack.c.l.b16 %v181
    %v219 = vunpack.c.l.b16 %v182
    %v220 = vunpack.c.l.b16 %v183
    %v221 = vunpack.c.l.b16 %v184
    %v222 = vunpack.c.l.b16 %v185
    %v223 = vunpack.c.l.b16 %v186
    %v224 = vunpack.c.l.b16 %v187
    %v225 = vunpack.c.l.b16 %v188
    %v226 = vunpack.c.l.b16 %v189
    %v227 = vunpack.c.l.b16 %v190
    %v228 = vunpack.c.l.b16 %v191
    %v229 = vunpack.c.l.b16 %v192
    %v230 = vpack.c.b16 %v215, %v214
    %v231 = vpack.c.b16 %v217, %v216
    %v232 = vpack.c.b16 %v219, %v218
    %v233 = vpack.c.b16 %v221, %v220
    %v234 = vpack.c.b16 %v223, %v222
    %v235 = vpack.c.b16 %v225, %v224
    %v236 = vpack.c.b16 %v227, %v226
    %v237 = vpack.c.b16 %v229, %v228
    %246 = vmatprep.subr.bf16.mxu0 0
    %247 = vmatpush1.bf16.msra.mxu0 %v237
    %248 = vmatprep.subr.bf16.mxu0 0
    %249 = vmatpush1.bf16.msra.mxu0 %v236
    %250 = vmatprep.subr.bf16.mxu0 0
    %251 = vmatpush1.bf16.msra.mxu0 %v235
    %252 = vmatprep.subr.bf16.mxu0 0
    %253 = vmatpush1.bf16.msra.mxu0 %v234
    %254 = vmatprep.subr.bf16.mxu0 0
    %255 = vmatpush1.bf16.msra.mxu0 %v233
    %256 = vmatprep.subr.bf16.mxu0 0
    %257 = vmatpush1.bf16.msra.mxu0 %v232
    %258 = vmatprep.subr.bf16.mxu0 0
    %259 = vmatpush1.bf16.msra.mxu0 %v231
    %260 = vmatprep.subr.bf16.mxu0 0
    %261 = vmatpush1.bf16.msra.mxu0 %v230
    %262 = vmatprep.subr.bf16.mxu0 0
    %263 = vmatpush2.bf16.msra.mxu0 0
    %264 = vmatprep.subr.bf16.mxu0 0
    %265 = vmatpush2.bf16.msra.mxu0 0
    %266 = vmatprep.subr.bf16.mxu0 0
    %267 = vmatpush2.bf16.msra.mxu0 0
    %268 = vmatprep.subr.bf16.mxu0 0
    %269 = vmatpush2.bf16.msra.mxu0 0
    %270 = vmatprep.subr.bf16.mxu0 0
    %271 = vmatpush2.bf16.msra.mxu0 0
    %272 = vmatprep.subr.bf16.mxu0 0
    %273 = vmatpush2.bf16.msra.mxu0 0
    %274 = vmatprep.subr.bf16.mxu0 0
    %275 = vmatpush2.bf16.msra.mxu0 0
    %276 = vmatprep.subr.bf16.mxu0 0
    %277 = vmatpush2.bf16.msra.mxu0 0
    %278 = vmatprep.mubr.bf16.mxu0 0
    %279 = vmatmul.mubr.bf16.gmra.mxu0 %v175
    %v280 = vpop.f32.mrf.mxu0
    %v281 = vadd.f32 %v197, %v280
    %v282 = vpop.f32.mrf.mxu0
    %v283 = vpop.f32.mrf.mxu0
    %v284 = vadd.f32 %v197, %v283
    %v285 = vpop.f32.mrf.mxu0
    %286 = vdwg.mxu0
    %v287 = vmax.f32 %v281, 0.0
    %v288 = vmax.f32 %v284, 0.0
    %v289 = vpack.c.bf16 %v288, %v287
    %s290 = scalar_lea.vmem [#allocation5], 128
    %v291 = vld [vmem:[%s290] sm:$0xf]
    %v292 = vld [vmem:[%s290 + $0x4] sm:$0xf]
    %v293 = vld [vmem:[%s290 + $0x8] sm:$0xf]
    %v294 = vld [vmem:[%s290 + $0xc] sm:$0xf]
    %v295 = vld [vmem:[%s290 + $0x10] sm:$0xf]
    %v296 = vld [vmem:[%s290 + $0x14] sm:$0xf]
    %v297 = vld [vmem:[%s290 + $0x18] sm:$0xf]
    %v298 = vld [vmem:[%s290 + $0x1c] sm:$0xf]
    %v299 = vld [vmem:[%s290 + $0x20] sm:$0xf]
    %v300 = vld [vmem:[%s290 + $0x24] sm:$0xf]
    %v301 = vld [vmem:[%s290 + $0x28] sm:$0xf]
    %v302 = vld [vmem:[%s290 + $0x2c] sm:$0xf]
    %v303 = vld [vmem:[%s290 + $0x30] sm:$0xf]
    %v304 = vld [vmem:[%s290 + $0x34] sm:$0xf]
    %v305 = vld [vmem:[%s290 + $0x38] sm:$0xf]
    %v306 = vld [vmem:[%s290 + $0x3c] sm:$0xf]
    %v307 = vld [vmem:[#allocation7 + $0x2] sm:$0x1]
    %v308 = vlaneseq
    %v309 = vshrl.u32 %v308, 7
    %v310 = vsub.s32 0, %v309
    %v311 = vrot.slane %v307, %v310
    %v328 = vunpack.c.l.b16 %v291
    %v329 = vunpack.c.l.b16 %v292
    %v330 = vunpack.c.l.b16 %v293
    %v331 = vunpack.c.l.b16 %v294
    %v332 = vunpack.c.l.b16 %v295
    %v333 = vunpack.c.l.b16 %v296
    %v334 = vunpack.c.l.b16 %v297
    %v335 = vunpack.c.l.b16 %v298
    %v336 = vunpack.c.l.b16 %v299
    %v337 = vunpack.c.l.b16 %v300
    %v338 = vunpack.c.l.b16 %v301
    %v339 = vunpack.c.l.b16 %v302
    %v340 = vunpack.c.l.b16 %v303
    %v341 = vunpack.c.l.b16 %v304
    %v342 = vunpack.c.l.b16 %v305
    %v343 = vunpack.c.l.b16 %v306
    %v344 = vpack.c.b16 %v329, %v328
    %v345 = vpack.c.b16 %v331, %v330
    %v346 = vpack.c.b16 %v333, %v332
    %v347 = vpack.c.b16 %v335, %v334
    %v348 = vpack.c.b16 %v337, %v336
    %v349 = vpack.c.b16 %v339, %v338
    %v350 = vpack.c.b16 %v341, %v340
    %v351 = vpack.c.b16 %v343, %v342
    %360 = vmatprep.subr.bf16.mxu0 0
    %361 = vmatpush1.bf16.msra.mxu0 %v351
    %362 = vmatprep.subr.bf16.mxu0 0
    %363 = vmatpush1.bf16.msra.mxu0 %v350
    %364 = vmatprep.subr.bf16.mxu0 0
    %365 = vmatpush1.bf16.msra.mxu0 %v349
    %366 = vmatprep.subr.bf16.mxu0 0
    %367 = vmatpush1.bf16.msra.mxu0 %v348
    %368 = vmatprep.subr.bf16.mxu0 0
    %369 = vmatpush1.bf16.msra.mxu0 %v347
    %370 = vmatprep.subr.bf16.mxu0 0
    %371 = vmatpush1.bf16.msra.mxu0 %v346
    %372 = vmatprep.subr.bf16.mxu0 0
    %373 = vmatpush1.bf16.msra.mxu0 %v345
    %374 = vmatprep.subr.bf16.mxu0 0
    %375 = vmatpush1.bf16.msra.mxu0 %v344
    %376 = vmatprep.subr.bf16.mxu0 0
    %377 = vmatpush2.bf16.msra.mxu0 0
    %378 = vmatprep.subr.bf16.mxu0 0
    %379 = vmatpush2.bf16.msra.mxu0 0
    %380 = vmatprep.subr.bf16.mxu0 0
    %381 = vmatpush2.bf16.msra.mxu0 0
    %382 = vmatprep.subr.bf16.mxu0 0
    %383 = vmatpush2.bf16.msra.mxu0 0
    %384 = vmatprep.subr.bf16.mxu0 0
    %385 = vmatpush2.bf16.msra.mxu0 0
    %386 = vmatprep.subr.bf16.mxu0 0
    %387 = vmatpush2.bf16.msra.mxu0 0
    %388 = vmatprep.subr.bf16.mxu0 0
    %389 = vmatpush2.bf16.msra.mxu0 0
    %390 = vmatprep.subr.bf16.mxu0 0
    %391 = vmatpush2.bf16.msra.mxu0 0
    %392 = vmatprep.mubr.bf16.mxu0 0
    %393 = vmatmul.mubr.bf16.gmra.mxu0 %v289
    %v394 = vpop.f32.mrf.mxu0
    %v395 = vadd.f32 %v311, %v394
    %v396 = vpop.f32.mrf.mxu0
    %v397 = vpop.f32.mrf.mxu0
    %v398 = vadd.f32 %v311, %v397
    %v399 = vpop.f32.mrf.mxu0
    %400 = vdwg.mxu0
    %v401 = vadd.f32 %v173, %v395
    %v402 = vadd.f32 %v174, %v398
    %v403 = vmax.f32 %v401, 0.0
    %v404 = vmax.f32 %v402, 0.0
    %v405 = vpack.c.bf16 %v404, %v403
    %s406 = scalar_lea.vmem [#allocation5], 192
    %v407 = vld [vmem:[%s406] sm:$0xf]
    %v408 = vld [vmem:[%s406 + $0x4] sm:$0xf]
    %v409 = vld [vmem:[%s406 + $0x8] sm:$0xf]
    %v410 = vld [vmem:[%s406 + $0xc] sm:$0xf]
    %v411 = vld [vmem:[%s406 + $0x10] sm:$0xf]
    %v412 = vld [vmem:[%s406 + $0x14] sm:$0xf]
    %v413 = vld [vmem:[%s406 + $0x18] sm:$0xf]
    %v414 = vld [vmem:[%s406 + $0x1c] sm:$0xf]
    %v415 = vld [vmem:[%s406 + $0x20] sm:$0xf]
    %v416 = vld [vmem:[%s406 + $0x24] sm:$0xf]
    %v417 = vld [vmem:[%s406 + $0x28] sm:$0xf]
    %v418 = vld [vmem:[%s406 + $0x2c] sm:$0xf]
    %v419 = vld [vmem:[%s406 + $0x30] sm:$0xf]
    %v420 = vld [vmem:[%s406 + $0x34] sm:$0xf]
    %v421 = vld [vmem:[%s406 + $0x38] sm:$0xf]
    %v422 = vld [vmem:[%s406 + $0x3c] sm:$0xf]
    %v423 = vld [vmem:[#allocation7 + $0x3] sm:$0x1]
    %v424 = vlaneseq
    %v425 = vshrl.u32 %v424, 7
    %v426 = vsub.s32 0, %v425
    %v427 = vrot.slane %v423, %v426
    %v444 = vunpack.c.l.b16 %v407
    %v445 = vunpack.c.l.b16 %v408
    %v446 = vunpack.c.l.b16 %v409
    %v447 = vunpack.c.l.b16 %v410
    %v448 = vunpack.c.l.b16 %v411
    %v449 = vunpack.c.l.b16 %v412
    %v450 = vunpack.c.l.b16 %v413
    %v451 = vunpack.c.l.b16 %v414
    %v452 = vunpack.c.l.b16 %v415
    %v453 = vunpack.c.l.b16 %v416
    %v454 = vunpack.c.l.b16 %v417
    %v455 = vunpack.c.l.b16 %v418
    %v456 = vunpack.c.l.b16 %v419
    %v457 = vunpack.c.l.b16 %v420
    %v458 = vunpack.c.l.b16 %v421
    %v459 = vunpack.c.l.b16 %v422
    %v460 = vpack.c.b16 %v445, %v444
    %v461 = vpack.c.b16 %v447, %v446
    %v462 = vpack.c.b16 %v449, %v448
    %v463 = vpack.c.b16 %v451, %v450
    %v464 = vpack.c.b16 %v453, %v452
    %v465 = vpack.c.b16 %v455, %v454
    %v466 = vpack.c.b16 %v457, %v456
    %v467 = vpack.c.b16 %v459, %v458
    %476 = vmatprep.subr.bf16.mxu0 0
    %477 = vmatpush1.bf16.msra.mxu0 %v467
    %478 = vmatprep.subr.bf16.mxu0 0
    %479 = vmatpush1.bf16.msra.mxu0 %v466
    %480 = vmatprep.subr.bf16.mxu0 0
    %481 = vmatpush1.bf16.msra.mxu0 %v465
    %482 = vmatprep.subr.bf16.mxu0 0
    %483 = vmatpush1.bf16.msra.mxu0 %v464
    %484 = vmatprep.subr.bf16.mxu0 0
    %485 = vmatpush1.bf16.msra.mxu0 %v463
    %486 = vmatprep.subr.bf16.mxu0 0
    %487 = vmatpush1.bf16.msra.mxu0 %v462
    %488 = vmatprep.subr.bf16.mxu0 0
    %489 = vmatpush1.bf16.msra.mxu0 %v461
    %490 = vmatprep.subr.bf16.mxu0 0
    %491 = vmatpush1.bf16.msra.mxu0 %v460
    %492 = vmatprep.subr.bf16.mxu0 0
    %493 = vmatpush2.bf16.msra.mxu0 0
    %494 = vmatprep.subr.bf16.mxu0 0
    %495 = vmatpush2.bf16.msra.mxu0 0
    %496 = vmatprep.subr.bf16.mxu0 0
    %497 = vmatpush2.bf16.msra.mxu0 0
    %498 = vmatprep.subr.bf16.mxu0 0
    %499 = vmatpush2.bf16.msra.mxu0 0
    %500 = vmatprep.subr.bf16.mxu0 0
    %501 = vmatpush2.bf16.msra.mxu0 0
    %502 = vmatprep.subr.bf16.mxu0 0
    %503 = vmatpush2.bf16.msra.mxu0 0
    %504 = vmatprep.subr.bf16.mxu0 0
    %505 = vmatpush2.bf16.msra.mxu0 0
    %506 = vmatprep.subr.bf16.mxu0 0
    %507 = vmatpush2.bf16.msra.mxu0 0
    %508 = vmatprep.mubr.bf16.mxu0 0
    %509 = vmatmul.mubr.bf16.gmra.mxu0 %v405
    %v510 = vpop.f32.mrf.mxu0
    %v511 = vadd.f32 %v427, %v510
    %v512 = vpop.f32.mrf.mxu0
    %v513 = vpop.f32.mrf.mxu0
    %v514 = vadd.f32 %v427, %v513
    %v515 = vpop.f32.mrf.mxu0
    %516 = vdwg.mxu0
    %v517 = vmax.f32 %v511, 0.0
    %v518 = vmax.f32 %v514, 0.0
    %v519 = vpack.c.bf16 %v518, %v517
    %s520 = scalar_lea.vmem [#allocation5], 256
    %v521 = vld [vmem:[%s520] sm:$0xf]
    %v522 = vld [vmem:[%s520 + $0x4] sm:$0xf]
    %v523 = vld [vmem:[%s520 + $0x8] sm:$0xf]
    %v524 = vld [vmem:[%s520 + $0xc] sm:$0xf]
    %v525 = vld [vmem:[%s520 + $0x10] sm:$0xf]
    %v526 = vld [vmem:[%s520 + $0x14] sm:$0xf]
    %v527 = vld [vmem:[%s520 + $0x18] sm:$0xf]
    %v528 = vld [vmem:[%s520 + $0x1c] sm:$0xf]
    %v529 = vld [vmem:[%s520 + $0x20] sm:$0xf]
    %v530 = vld [vmem:[%s520 + $0x24] sm:$0xf]
    %v531 = vld [vmem:[%s520 + $0x28] sm:$0xf]
    %v532 = vld [vmem:[%s520 + $0x2c] sm:$0xf]
    %v533 = vld [vmem:[%s520 + $0x30] sm:$0xf]
    %v534 = vld [vmem:[%s520 + $0x34] sm:$0xf]
    %v535 = vld [vmem:[%s520 + $0x38] sm:$0xf]
    %v536 = vld [vmem:[%s520 + $0x3c] sm:$0xf]
    %v537 = vld [vmem:[#allocation7 + $0x4] sm:$0x1]
    %v538 = vlaneseq
    %v539 = vshrl.u32 %v538, 7
    %v540 = vsub.s32 0, %v539
    %v541 = vrot.slane %v537, %v540
    %v558 = vunpack.c.l.b16 %v521
    %v559 = vunpack.c.l.b16 %v522
    %v560 = vunpack.c.l.b16 %v523
    %v561 = vunpack.c.l.b16 %v524
    %v562 = vunpack.c.l.b16 %v525
    %v563 = vunpack.c.l.b16 %v526
    %v564 = vunpack.c.l.b16 %v527
    %v565 = vunpack.c.l.b16 %v528
    %v566 = vunpack.c.l.b16 %v529
    %v567 = vunpack.c.l.b16 %v530
    %v568 = vunpack.c.l.b16 %v531
    %v569 = vunpack.c.l.b16 %v532
    %v570 = vunpack.c.l.b16 %v533
    %v571 = vunpack.c.l.b16 %v534
    %v572 = vunpack.c.l.b16 %v535
    %v573 = vunpack.c.l.b16 %v536
    %v574 = vpack.c.b16 %v559, %v558
    %v575 = vpack.c.b16 %v561, %v560
    %v576 = vpack.c.b16 %v563, %v562
    %v577 = vpack.c.b16 %v565, %v564
    %v578 = vpack.c.b16 %v567, %v566
    %v579 = vpack.c.b16 %v569, %v568
    %v580 = vpack.c.b16 %v571, %v570
    %v581 = vpack.c.b16 %v573, %v572
    %590 = vmatprep.subr.bf16.mxu0 0
    %591 = vmatpush1.bf16.msra.mxu0 %v581
    %592 = vmatprep.subr.bf16.mxu0 0
    %593 = vmatpush1.bf16.msra.mxu0 %v580
    %594 = vmatprep.subr.bf16.mxu0 0
    %595 = vmatpush1.bf16.msra.mxu0 %v579
    %596 = vmatprep.subr.bf16.mxu0 0
    %597 = vmatpush1.bf16.msra.mxu0 %v578
    %598 = vmatprep.subr.bf16.mxu0 0
    %599 = vmatpush1.bf16.msra.mxu0 %v577
    %600 = vmatprep.subr.bf16.mxu0 0
    %601 = vmatpush1.bf16.msra.mxu0 %v576
    %602 = vmatprep.subr.bf16.mxu0 0
    %603 = vmatpush1.bf16.msra.mxu0 %v575
    %604 = vmatprep.subr.bf16.mxu0 0
    %605 = vmatpush1.bf16.msra.mxu0 %v574
    %606 = vmatprep.subr.bf16.mxu0 0
    %607 = vmatpush2.bf16.msra.mxu0 0
    %608 = vmatprep.subr.bf16.mxu0 0
    %609 = vmatpush2.bf16.msra.mxu0 0
    %610 = vmatprep.subr.bf16.mxu0 0
    %611 = vmatpush2.bf16.msra.mxu0 0
    %612 = vmatprep.subr.bf16.mxu0 0
    %613 = vmatpush2.bf16.msra.mxu0 0
    %614 = vmatprep.subr.bf16.mxu0 0
    %615 = vmatpush2.bf16.msra.mxu0 0
    %616 = vmatprep.subr.bf16.mxu0 0
    %617 = vmatpush2.bf16.msra.mxu0 0
    %618 = vmatprep.subr.bf16.mxu0 0
    %619 = vmatpush2.bf16.msra.mxu0 0
    %620 = vmatprep.subr.bf16.mxu0 0
    %621 = vmatpush2.bf16.msra.mxu0 0
    %622 = vmatprep.mubr.bf16.mxu0 0
    %623 = vmatmul.mubr.bf16.gmra.mxu0 %v519
    %v624 = vpop.f32.mrf.mxu0
    %v625 = vadd.f32 %v541, %v624
    %v626 = vpop.f32.mrf.mxu0
    %v627 = vpop.f32.mrf.mxu0
    %v628 = vadd.f32 %v541, %v627
    %v629 = vpop.f32.mrf.mxu0
    %630 = vdwg.mxu0
    %v631 = vxor.u32 %v625, 2147483648
    %v632 = vxor.u32 %v628, 2147483648
    %v633 = vmul.f32 %v631, 1.442695
    %v634 = vpow.pop %v633
    %v635 = vmul.f32 %v632, 1.442695
    %v636 = vpow.pop %v635
    %v637 = vadd.f32 %v634, 1.0
    %v638 = vadd.f32 %v636, 1.0
    %v639 = vrcp.pop %v637
    %v640 = vmul.f32 1.0, %v639
    %v641 = vrcp.pop %v638
    %v642 = vmul.f32 1.0, %v641
    %v643 = vmul.f32 %v403, %v640
    %v644 = vmul.f32 %v404, %v642
    %v645 = vpack.c.bf16 %v644, %v643
    %s646 = scalar_lea.vmem [#allocation5], 320
    %v647 = vld [vmem:[%s646] sm:$0xf]
    %v648 = vld [vmem:[%s646 + $0x4] sm:$0xf]
    %v649 = vld [vmem:[%s646 + $0x8] sm:$0xf]
    %v650 = vld [vmem:[%s646 + $0xc] sm:$0xf]
    %v651 = vld [vmem:[%s646 + $0x10] sm:$0xf]
    %v652 = vld [vmem:[%s646 + $0x14] sm:$0xf]
    %v653 = vld [vmem:[%s646 + $0x18] sm:$0xf]
    %v654 = vld [vmem:[%s646 + $0x1c] sm:$0xf]
    %v655 = vld [vmem:[%s646 + $0x20] sm:$0xf]
    %v656 = vld [vmem:[%s646 + $0x24] sm:$0xf]
    %v657 = vld [vmem:[%s646 + $0x28] sm:$0xf]
    %v658 = vld [vmem:[%s646 + $0x2c] sm:$0xf]
    %v659 = vld [vmem:[%s646 + $0x30] sm:$0xf]
    %v660 = vld [vmem:[%s646 + $0x34] sm:$0xf]
    %v661 = vld [vmem:[%s646 + $0x38] sm:$0xf]
    %v662 = vld [vmem:[%s646 + $0x3c] sm:$0xf]
    %v663 = vld [vmem:[#allocation7 + $0x5] sm:$0x1]
    %v664 = vlaneseq
    %v665 = vshrl.u32 %v664, 7
    %v666 = vsub.s32 0, %v665
    %v667 = vrot.slane %v663, %v666
    %v684 = vunpack.c.l.b16 %v647
    %v685 = vunpack.c.l.b16 %v648
    %v686 = vunpack.c.l.b16 %v649
    %v687 = vunpack.c.l.b16 %v650
    %v688 = vunpack.c.l.b16 %v651
    %v689 = vunpack.c.l.b16 %v652
    %v690 = vunpack.c.l.b16 %v653
    %v691 = vunpack.c.l.b16 %v654
    %v692 = vunpack.c.l.b16 %v655
    %v693 = vunpack.c.l.b16 %v656
    %v694 = vunpack.c.l.b16 %v657
    %v695 = vunpack.c.l.b16 %v658
    %v696 = vunpack.c.l.b16 %v659
    %v697 = vunpack.c.l.b16 %v660
    %v698 = vunpack.c.l.b16 %v661
    %v699 = vunpack.c.l.b16 %v662
    %v700 = vpack.c.b16 %v685, %v684
    %v701 = vpack.c.b16 %v687, %v686
    %v702 = vpack.c.b16 %v689, %v688
    %v703 = vpack.c.b16 %v691, %v690
    %v704 = vpack.c.b16 %v693, %v692
    %v705 = vpack.c.b16 %v695, %v694
    %v706 = vpack.c.b16 %v697, %v696
    %v707 = vpack.c.b16 %v699, %v698
    %716 = vmatprep.subr.bf16.mxu0 0
    %717 = vmatpush1.bf16.msra.mxu0 %v707
    %718 = vmatprep.subr.bf16.mxu0 0
    %719 = vmatpush1.bf16.msra.mxu0 %v706
    %720 = vmatprep.subr.bf16.mxu0 0
    %721 = vmatpush1.bf16.msra.mxu0 %v705
    %722 = vmatprep.subr.bf16.mxu0 0
    %723 = vmatpush1.bf16.msra.mxu0 %v704
    %724 = vmatprep.subr.bf16.mxu0 0
    %725 = vmatpush1.bf16.msra.mxu0 %v703
    %726 = vmatprep.subr.bf16.mxu0 0
    %727 = vmatpush1.bf16.msra.mxu0 %v702
    %728 = vmatprep.subr.bf16.mxu0 0
    %729 = vmatpush1.bf16.msra.mxu0 %v701
    %730 = vmatprep.subr.bf16.mxu0 0
    %731 = vmatpush1.bf16.msra.mxu0 %v700
    %732 = vmatprep.subr.bf16.mxu0 0
    %733 = vmatpush2.bf16.msra.mxu0 0
    %734 = vmatprep.subr.bf16.mxu0 0
    %735 = vmatpush2.bf16.msra.mxu0 0
    %736 = vmatprep.subr.bf16.mxu0 0
    %737 = vmatpush2.bf16.msra.mxu0 0
    %738 = vmatprep.subr.bf16.mxu0 0
    %739 = vmatpush2.bf16.msra.mxu0 0
    %740 = vmatprep.subr.bf16.mxu0 0
    %741 = vmatpush2.bf16.msra.mxu0 0
    %742 = vmatprep.subr.bf16.mxu0 0
    %743 = vmatpush2.bf16.msra.mxu0 0
    %744 = vmatprep.subr.bf16.mxu0 0
    %745 = vmatpush2.bf16.msra.mxu0 0
    %746 = vmatprep.subr.bf16.mxu0 0
    %747 = vmatpush2.bf16.msra.mxu0 0
    %748 = vmatprep.mubr.bf16.mxu0 0
    %749 = vmatmul.mubr.bf16.gmra.mxu0 %v645
    %v750 = vpop.f32.mrf.mxu0
    %v751 = vadd.f32 %v667, %v750
    %v752 = vpop.f32.mrf.mxu0
    %v753 = vpop.f32.mrf.mxu0
    %v754 = vadd.f32 %v667, %v753
    %v755 = vpop.f32.mrf.mxu0
    %756 = vdwg.mxu0
    %v757 = vpack.c.bf16 %v754, %v751
    %v759 = vunpack.c.l.b16 %v757
    %v760 = vunpack.c.h.b16 %v757
    %v761 = vpack.c.b16 %v759, %v759
    %v762 = vpack.c.b16 %v760, %v760
    %765 = vst [vmem:[#allocation8] sm:$0xf] %v761
    %766 = vst [vmem:[#allocation8 + $0x4] sm:$0xf] %v762
    // Predicated region
    $region26: #{tpu_custom_call.1} parent=1 // pred_check
      _
    $region27: #{tpu_custom_call.1} parent=1 // pred_check_branch
      %768 = sbr.rel (0) target = $region29
    $region28: #{tpu_custom_call.1} parent=1 // pred_region
      %s770 = ssub.s32 128, 128
      %771 = vsyncadd [#allocation4], %s770
      %s772 = sshll.u32 [#allocation8], 4
      %s773 = int_to_ptr.vmem [resolvable:$true] %s772
      %778 = dma.vmem_to_hbm [thread:$0]  %s773, 128, %s3, [#allocation4], 64, 64, 4
    $region29: #{tpu_custom_call.1} parent=1 // pred_fallthru
      _
    // Predicated region
    $region30: #{tpu_custom_call.1} parent=1 // pred_check
      _
    $region31: #{tpu_custom_call.1} parent=1 // pred_check_branch
      %780 = sbr.rel (0) target = $region33
    $region32: #{tpu_custom_call.1} parent=1 // pred_region
      %781 = dma.done [#allocation4], 128
    $region33: #{tpu_custom_call.1} parent=1 // pred_fallthru
      _
    %782 = vsyncpa [#allocation3], 1
    %783 = vsyncpa [#allocation6], 1
    %784 = vsyncpa [#allocation4], 1

</llo_original>
